<compile_context>
chip_gen: v7x
topology: tpu7x:2x2x1
jax: 0.10.0
libtpu: 0.0.40
codegen_flags: <defaults>
</compile_context>

<pallas_src>
import jax
import jax.numpy as jnp
from jax.experimental import pallas as pl
from jax.experimental.pallas import tpu as pltpu


def generator_kernel(x_ref, cw_ref, wp_ref, beff_ref, out_ref):
    # x_ref   : (B, S, D)  whole batch of activations
    # cw_ref  : (S, 1)     Conv1d(252->1, k=1) weights (S on the sublane axis)
    # wp_ref  : (D, V)     Linear weight, pre-transposed (weight.T)
    # beff_ref: (1, V)     fused bias: sum(cw) * proj_bias + conv_bias
    # out_ref : (B, V)     log-probabilities
    x = x_ref[...]                                   # (B, S, D)
    cw = cw_ref[...]                                 # (S, 1)

    # 1x1 conv over the S channel axis, applied before the projection
    # (exact algebraic reorder of conv(proj(x))):
    #   r[b, d] = sum_s cw[s] * x[b, s, d]
    r = jnp.sum(x * cw[None, :, :], axis=1)          # (B, D)

    # Projection to vocab with the fused bias.
    logits = jnp.dot(r, wp_ref[...],
                     preferred_element_type=jnp.float32) + beff_ref[...]  # (B, V)

    # Numerically stable log_softmax over the vocab axis (kept in f32).
    m = jnp.max(logits, axis=-1, keepdims=True)
    e = jnp.exp(logits - m)
    lse = m + jnp.log(jnp.sum(e, axis=-1, keepdims=True))
    out_ref[...] = (logits - lse).astype(out_ref.dtype)


def generator_forward(x, wp_t, bp, cw, cb):
    """x: (B, S, D) f32. Returns (B, V) f32 log-probs (== torch .squeeze(1))."""
    B, S, D = x.shape
    V = wp_t.shape[1]

    # Fold both biases into a single (1, V) vector (exact, since conv is linear):
    #   cw @ (x @ Wp + bp) + cb == (cw @ x) @ Wp + sum(cw) * bp + cb
    b_eff = jnp.sum(cw) * bp + cb                    # (1, V)
    cw_col = cw.reshape(S, 1)                        # (S, 1)

    return pl.pallas_call(
        generator_kernel,
        out_shape=jax.ShapeDtypeStruct((B, V), jnp.float32),
        grid=(1,),                                   # single step: whole batch fused
        in_specs=[
            pl.BlockSpec((B, S, D), lambda i: (0, 0, 0)),  # x, full batch
            pl.BlockSpec((S, 1), lambda i: (0, 0)),        # conv weight (column)
            pl.BlockSpec((D, V), lambda i: (0, 0)),        # proj weight^T
            pl.BlockSpec((1, V), lambda i: (0, 0)),        # fused bias
        ],
        out_specs=pl.BlockSpec((B, V), lambda i: (0, 0)),
        compiler_params=pltpu.CompilerParams(
            dimension_semantics=("arbitrary",)),
    )(x, cw_col, wp_t, b_eff)


def reference_forward(x, wp_t, bp, cw, cb):
    """Pure-JAX reference matching torch semantics (proj -> conv -> log_softmax)."""
    y = jnp.einsum("bsd,dv->bsv", x, wp_t) + bp          # nn.Linear(d_model, vocab)
    z = jnp.einsum("s,bsv->bv", cw[0], y) + cb[0, 0]     # nn.Conv1d(252, 1, 1)
    lp = jax.nn.log_softmax(z[:, None, :], axis=-1)      # (B, 1, V)
    return jnp.squeeze(lp, axis=1)                       # (B, V)


if __name__ == "__main__":
    # Small shapes consistent with the module: the conv fixes S (channels) = 252.
    B, S, D, V = 2, 252, 32, 128

    key = jax.random.PRNGKey(0)
    kx, kwp, kbp, kcw, kcb = jax.random.split(key, 5)

    x = jax.random.normal(kx, (B, S, D), dtype=jnp.float32)

    # nn.Linear(d_model, vocab): weight (V, D), bias (V,)  -> stored as weight.T (D, V)
    wp_t = jax.random.normal(kwp, (D, V), dtype=jnp.float32) / jnp.sqrt(D)
    bp = jax.random.normal(kbp, (1, V), dtype=jnp.float32) * 0.01
    # nn.Conv1d(252, 1, 1): weight (1, 252, 1), bias (1,) -> stored as (1, S), (1, 1)
    cw = jax.random.normal(kcw, (1, S), dtype=jnp.float32) / jnp.sqrt(S)
    cb = jax.random.normal(kcb, (1, 1), dtype=jnp.float32) * 0.01

    out = generator_forward(x, wp_t, bp, cw, cb)
    out = jax.block_until_ready(out)

    ref = reference_forward(x, wp_t, bp, cw, cb)
    assert out.shape == (B, V), out.shape
    max_err = float(jnp.max(jnp.abs(out - ref)))
    assert jnp.allclose(out, ref, atol=1e-4, rtol=1e-4), max_err

    print("KERNEL_OK")
</pallas_src>

<mosaic_0001>
module attributes {stable_mosaic.version = 11 : i64} {
  func.func @generator_kernel(%arg0: i32, %arg1: memref<2x252x32xf32, #tpu.memory_space<vmem>>, %arg2: memref<252x1xf32, #tpu.memory_space<vmem>>, %arg3: memref<32x128xf32, #tpu.memory_space<vmem>>, %arg4: memref<1x128xf32, #tpu.memory_space<vmem>>, %arg5: memref<2x128xf32, #tpu.memory_space<vmem>>) attributes {dimension_semantics = [#tpu.dimension_semantics<arbitrary>], iteration_bounds = array<i64: 1>, scalar_prefetch = 0 : i64, scratch_operands = 0 : i64, tpu.core_type = #tpu.core_type<tc>, window_params = [{pipeline_mode = #tpu.pipeline_mode<synchronous>, transform_indices = @transform_0, window_bounds = array<i64: 2, 252, 32>}, {pipeline_mode = #tpu.pipeline_mode<synchronous>, transform_indices = @transform_1, window_bounds = array<i64: 252, 1>}, {pipeline_mode = #tpu.pipeline_mode<synchronous>, transform_indices = @transform_2, window_bounds = array<i64: 32, 128>}, {pipeline_mode = #tpu.pipeline_mode<synchronous>, transform_indices = @transform_3, window_bounds = array<i64: 1, 128>}, {pipeline_mode = #tpu.pipeline_mode<synchronous>, transform_indices = @transform_4, window_bounds = array<i64: 2, 128>}]} {
    %c0 = arith.constant 0 : index
    %c0_0 = arith.constant 0 : index
    %c0_1 = arith.constant 0 : index
    %0 = vector.load %arg1[%c0, %c0_0, %c0_1] : memref<2x252x32xf32, #tpu.memory_space<vmem>>, vector<2x252x32xf32>
    %c0_2 = arith.constant 0 : index
    %c0_3 = arith.constant 0 : index
    %1 = vector.load %arg2[%c0_2, %c0_3] : memref<252x1xf32, #tpu.memory_space<vmem>>, vector<252x1xf32>
    %2 = vector.shape_cast %1 : vector<252x1xf32> to vector<1x252x1xf32>
    %3 = vector.broadcast %2 : vector<1x252x1xf32> to vector<2x252x32xf32>
    %4 = arith.mulf %0, %3 : vector<2x252x32xf32>
    %cst = arith.constant dense<0.000000e+00> : vector<2x32xf32>
    %5 = vector.multi_reduction <add>, %4, %cst [1] : vector<2x252x32xf32> to vector<2x32xf32>
    %c0_4 = arith.constant 0 : index
    %c0_5 = arith.constant 0 : index
    %6 = vector.load %arg3[%c0_4, %c0_5] : memref<32x128xf32, #tpu.memory_space<vmem>>, vector<32x128xf32>
    %cst_6 = arith.constant dense<0.000000e+00> : vector<2x128xf32>
    %7 = tpu.matmul %5, %6, %cst_6 {dimension_numbers = #tpu.dot_dimension_numbers<[1], [0], [0], [1], [0, 0, 1, 1], [], []>} : vector<2x32xf32>, vector<32x128xf32>, vector<2x128xf32> -> vector<2x128xf32>
    %c0_7 = arith.constant 0 : index
    %c0_8 = arith.constant 0 : index
    %8 = vector.load %arg4[%c0_7, %c0_8] : memref<1x128xf32, #tpu.memory_space<vmem>>, vector<1x128xf32>
    %9 = vector.broadcast %8 : vector<1x128xf32> to vector<2x128xf32>
    %10 = arith.addf %7, %9 : vector<2x128xf32>
    %cst_9 = arith.constant dense<0xFF800000> : vector<2xf32>
    %11 = vector.multi_reduction <maximumf>, %10, %cst_9 [1] : vector<2x128xf32> to vector<2xf32>
    %12 = vector.shape_cast %11 : vector<2xf32> to vector<2x1xf32>
    %13 = vector.broadcast %12 : vector<2x1xf32> to vector<2x128xf32>
    %14 = arith.subf %10, %13 : vector<2x128xf32>
    %15 = math.exp %14 : vector<2x128xf32>
    %cst_10 = arith.constant dense<0.000000e+00> : vector<2xf32>
    %16 = vector.multi_reduction <add>, %15, %cst_10 [1] : vector<2x128xf32> to vector<2xf32>
    %17 = vector.shape_cast %16 : vector<2xf32> to vector<2x1xf32>
    %18 = math.log %17 : vector<2x1xf32>
    %19 = arith.addf %12, %18 : vector<2x1xf32>
    %20 = vector.broadcast %19 : vector<2x1xf32> to vector<2x128xf32>
    %21 = arith.subf %10, %20 : vector<2x128xf32>
    %c0_11 = arith.constant 0 : index
    %c0_12 = arith.constant 0 : index
    %22 = vector.load %arg5[%c0_11, %c0_12] : memref<2x128xf32, #tpu.memory_space<vmem>>, vector<2x128xf32>
    tpu.vector_store %arg5[%c0_11, %c0_12], %21 {strides = array<i32>} : memref<2x128xf32, #tpu.memory_space<vmem>>, vector<2x128xf32>,
    return
  }
  func.func @transform_0(%arg0: i32) -> (i32, i32, i32) {
    %c0_i32 = arith.constant 0 : i32
    %c0_i32_0 = arith.constant 0 : i32
    %c0_i32_1 = arith.constant 0 : i32
    %c0_i32_2 = arith.constant 0 : i32
    return %c0_i32, %c0_i32_0, %c0_i32_1 : i32, i32, i32
  }
  func.func @transform_1(%arg0: i32) -> (i32, i32) {
    %c0_i32 = arith.constant 0 : i32
    %c0_i32_0 = arith.constant 0 : i32
    %c0_i32_1 = arith.constant 0 : i32
    return %c0_i32, %c0_i32_0 : i32, i32
  }
  func.func @transform_2(%arg0: i32) -> (i32, i32) {
    %c0_i32 = arith.constant 0 : i32
    %c0_i32_0 = arith.constant 0 : i32
    %c0_i32_1 = arith.constant 0 : i32
    return %c0_i32, %c0_i32_0 : i32, i32
  }
  func.func @transform_3(%arg0: i32) -> (i32, i32) {
    %c0_i32 = arith.constant 0 : i32
    %c0_i32_0 = arith.constant 0 : i32
    %c0_i32_1 = arith.constant 0 : i32
    return %c0_i32, %c0_i32_0 : i32, i32
  }
  func.func @transform_4(%arg0: i32) -> (i32, i32) {
    %c0_i32 = arith.constant 0 : i32
    %c0_i32_0 = arith.constant 0 : i32
    %c0_i32_1 = arith.constant 0 : i32
    return %c0_i32, %c0_i32_0 : i32, i32
  }
}

</mosaic_0001>

<llo_original>
// kernel: tpu_custom_call.1
$region0: #{tpu_custom_call.1}
  #allocation0 [shape = 'u32[]', space=smem, size = 0x4, offset = 0x4, fixed_abs, tag = 'smem constant byte address 0x4 - core index']
  #allocation1 [shape = 'u32[144,128]{1,0:T(1,128)}', space=vmem, size = 0x12000, scoped, tag = 'internal scratch']
  %s0 = inlined_call_operand.vmem [shape: f32[2,252,32], index: 0, kind: input, shape index: {}]
  %s1 = inlined_call_operand.vmem [shape: f32[252,1], index: 1, kind: input, shape index: {}]
  %s2 = inlined_call_operand.vmem [shape: f32[32,128], index: 2, kind: input, shape index: {}]
  %s3 = inlined_call_operand.vmem [shape: f32[1,128], index: 3, kind: input, shape index: {}]
  %s4 = inlined_call_operand.hbm [shape: f32[2,128], index: 4, kind: output, shape index: {}]
  %s5 = sld [smem:[#allocation0]]
  $region26: #{tpu_custom_call.1} parent=0
    _
  %s7 = ssub.s32 1, %s5
  %s8 = scalar_select 0, %s7, %s5
  $region1: #{tpu_custom_call.1} parent=0
    #allocation2 [shape = 'u8[1024]{0}', space=vmem, size = 0x400, scoped, tag = 'output window, operand 0, single buffered']
    #allocation3 [shape = 's32[1]{0}', space=sflag, size = 0x4, scoped, tag = 'scoped memory for tpu_custom_call.1']
    %9 = vsyncpa [#allocation3], 0
    // Predicated region
    $region2: #{tpu_custom_call.1} parent=1 // pred_check
      _
    $region3: #{tpu_custom_call.1} parent=1 // pred_check_branch
      %11 = sbr.rel (0) target = $region5
    $region4: #{tpu_custom_call.1} parent=1 // pred_region
      _
    $region5: #{tpu_custom_call.1} parent=1 // pred_fallthru
      _
    // Predicated region
    $region6: #{tpu_custom_call.1} parent=1 // pred_check
      _
    $region7: #{tpu_custom_call.1} parent=1 // pred_check_branch
      %13 = sbr.rel (0) target = $region9
    $region8: #{tpu_custom_call.1} parent=1 // pred_region
      _
    $region9: #{tpu_custom_call.1} parent=1 // pred_fallthru
      _
    // Predicated region
    $region10: #{tpu_custom_call.1} parent=1 // pred_check
      _
    $region11: #{tpu_custom_call.1} parent=1 // pred_check_branch
      %15 = sbr.rel (0) target = $region13
    $region12: #{tpu_custom_call.1} parent=1 // pred_region
      _
    $region13: #{tpu_custom_call.1} parent=1 // pred_fallthru
      _
    // Predicated region
    $region14: #{tpu_custom_call.1} parent=1 // pred_check
      _
    $region15: #{tpu_custom_call.1} parent=1 // pred_check_branch
      %17 = sbr.rel (0) target = $region17
    $region16: #{tpu_custom_call.1} parent=1 // pred_region
      _
    $region17: #{tpu_custom_call.1} parent=1 // pred_fallthru
      _
    %v18 = vld [vmem:[%s0] sm:$0xff]
    %v19 = vld [vmem:[%s0 + $0x8] sm:$0xff]
    %v20 = vld [vmem:[%s0 + $0x10] sm:$0xff]
    %v21 = vld [vmem:[%s0 + $0x18] sm:$0xff]
    %v22 = vld [vmem:[%s0 + $0x20] sm:$0xff]
    %v23 = vld [vmem:[%s0 + $0x28] sm:$0xff]
    %v24 = vld [vmem:[%s0 + $0x30] sm:$0xff]
    %v25 = vld [vmem:[%s0 + $0x38] sm:$0xff]
    %v26 = vld [vmem:[%s0 + $0x40] sm:$0xff]
    %v27 = vld [vmem:[%s0 + $0x48] sm:$0xff]
    %v28 = vld [vmem:[%s0 + $0x50] sm:$0xff]
    %v29 = vld [vmem:[%s0 + $0x58] sm:$0xff]
    %v30 = vld [vmem:[%s0 + $0x60] sm:$0xff]
    %v31 = vld [vmem:[%s0 + $0x68] sm:$0xff]
    %v32 = vld [vmem:[%s0 + $0x70] sm:$0xff]
    %v33 = vld [vmem:[%s0 + $0x78] sm:$0xff]
    %v34 = vld [vmem:[%s0 + $0x80] sm:$0xff]
    %v35 = vld [vmem:[%s0 + $0x88] sm:$0xff]
    %v36 = vld [vmem:[%s0 + $0x90] sm:$0xff]
    %v37 = vld [vmem:[%s0 + $0x98] sm:$0xff]
    %v38 = vld [vmem:[%s0 + $0xa0] sm:$0xff]
    %v39 = vld [vmem:[%s0 + $0xa8] sm:$0xff]
    %v40 = vld [vmem:[%s0 + $0xb0] sm:$0xff]
    %v41 = vld [vmem:[%s0 + $0xb8] sm:$0xff]
    %v42 = vld [vmem:[%s0 + $0xc0] sm:$0xff]
    %v43 = vld [vmem:[%s0 + $0xc8] sm:$0xff]
    %v44 = vld [vmem:[%s0 + $0xd0] sm:$0xff]
    %v45 = vld [vmem:[%s0 + $0xd8] sm:$0xff]
    %v46 = vld [vmem:[%s0 + $0xe0] sm:$0xff]
    %v47 = vld [vmem:[%s0 + $0xe8] sm:$0xff]
    %v48 = vld [vmem:[%s0 + $0xf0] sm:$0xff]
    %v49 = vld [vmem:[%s0 + $0xf8] sm:$0xf]
    %v50 = vld [vmem:[%s0 + $0x100] sm:$0xff]
    %v51 = vld [vmem:[%s0 + $0x108] sm:$0xff]
    %v52 = vld [vmem:[%s0 + $0x110] sm:$0xff]
    %v53 = vld [vmem:[%s0 + $0x118] sm:$0xff]
    %v54 = vld [vmem:[%s0 + $0x120] sm:$0xff]
    %v55 = vld [vmem:[%s0 + $0x128] sm:$0xff]
    %v56 = vld [vmem:[%s0 + $0x130] sm:$0xff]
    %v57 = vld [vmem:[%s0 + $0x138] sm:$0xff]
    %v58 = vld [vmem:[%s0 + $0x140] sm:$0xff]
    %v59 = vld [vmem:[%s0 + $0x148] sm:$0xff]
    %v60 = vld [vmem:[%s0 + $0x150] sm:$0xff]
    %v61 = vld [vmem:[%s0 + $0x158] sm:$0xff]
    %v62 = vld [vmem:[%s0 + $0x160] sm:$0xff]
    %v63 = vld [vmem:[%s0 + $0x168] sm:$0xff]
    %v64 = vld [vmem:[%s0 + $0x170] sm:$0xff]
    %v65 = vld [vmem:[%s0 + $0x178] sm:$0xff]
    %v66 = vld [vmem:[%s0 + $0x180] sm:$0xff]
    %v67 = vld [vmem:[%s0 + $0x188] sm:$0xff]
    %v68 = vld [vmem:[%s0 + $0x190] sm:$0xff]
    %v69 = vld [vmem:[%s0 + $0x198] sm:$0xff]
    %v70 = vld [vmem:[%s0 + $0x1a0] sm:$0xff]
    %v71 = vld [vmem:[%s0 + $0x1a8] sm:$0xff]
    %v72 = vld [vmem:[%s0 + $0x1b0] sm:$0xff]
    %v73 = vld [vmem:[%s0 + $0x1b8] sm:$0xff]
    %v74 = vld [vmem:[%s0 + $0x1c0] sm:$0xff]
    %v75 = vld [vmem:[%s0 + $0x1c8] sm:$0xff]
    %v76 = vld [vmem:[%s0 + $0x1d0] sm:$0xff]
    %v77 = vld [vmem:[%s0 + $0x1d8] sm:$0xff]
    %v78 = vld [vmem:[%s0 + $0x1e0] sm:$0xff]
    %v79 = vld [vmem:[%s0 + $0x1e8] sm:$0xff]
    %v80 = vld [vmem:[%s0 + $0x1f0] sm:$0xff]
    %v81 = vld [vmem:[%s0 + $0x1f8] sm:$0xf]
    %v82 = vld [vmem:[%s1] sm:$0xff]
    %v83 = vld [vmem:[%s1 + $0x8] sm:$0xff]
    %v84 = vld [vmem:[%s1 + $0x10] sm:$0xff]
    %v85 = vld [vmem:[%s1 + $0x18] sm:$0xff]
    %v86 = vld [vmem:[%s1 + $0x20] sm:$0xff]
    %v87 = vld [vmem:[%s1 + $0x28] sm:$0xff]
    %v88 = vld [vmem:[%s1 + $0x30] sm:$0xff]
    %v89 = vld [vmem:[%s1 + $0x38] sm:$0xff]
    %v90 = vld [vmem:[%s1 + $0x40] sm:$0xff]
    %v91 = vld [vmem:[%s1 + $0x48] sm:$0xff]
    %v92 = vld [vmem:[%s1 + $0x50] sm:$0xff]
    %v93 = vld [vmem:[%s1 + $0x58] sm:$0xff]
    %v94 = vld [vmem:[%s1 + $0x60] sm:$0xff]
    %v95 = vld [vmem:[%s1 + $0x68] sm:$0xff]
    %v96 = vld [vmem:[%s1 + $0x70] sm:$0xff]
    %v97 = vld [vmem:[%s1 + $0x78] sm:$0xff]
    %v98 = vld [vmem:[%s1 + $0x80] sm:$0xff]
    %v99 = vld [vmem:[%s1 + $0x88] sm:$0xff]
    %v100 = vld [vmem:[%s1 + $0x90] sm:$0xff]
    %v101 = vld [vmem:[%s1 + $0x98] sm:$0xff]
    %v102 = vld [vmem:[%s1 + $0xa0] sm:$0xff]
    %v103 = vld [vmem:[%s1 + $0xa8] sm:$0xff]
    %v104 = vld [vmem:[%s1 + $0xb0] sm:$0xff]
    %v105 = vld [vmem:[%s1 + $0xb8] sm:$0xff]
    %v106 = vld [vmem:[%s1 + $0xc0] sm:$0xff]
    %v107 = vld [vmem:[%s1 + $0xc8] sm:$0xff]
    %v108 = vld [vmem:[%s1 + $0xd0] sm:$0xff]
    %v109 = vld [vmem:[%s1 + $0xd8] sm:$0xff]
    %v110 = vld [vmem:[%s1 + $0xe0] sm:$0xff]
    %v111 = vld [vmem:[%s1 + $0xe8] sm:$0xff]
    %v112 = vld [vmem:[%s1 + $0xf0] sm:$0xff]
    %v113 = vld [vmem:[%s1 + $0xf8] sm:$0xf]
    %115 = vset.pattern.permute.xlu0 0
    %116 = vperm.xlu0 %115, %v82
    %v117 = vpop.permute.xlu0 %116
    %120 = vset.pattern.permute.xlu0 0
    %121 = vperm.xlu0 %120, %v83
    %v122 = vpop.permute.xlu0 %121
    %125 = vset.pattern.permute.xlu0 0
    %126 = vperm.xlu0 %125, %v84
    %v127 = vpop.permute.xlu0 %126
    %130 = vset.pattern.permute.xlu0 0
    %131 = vperm.xlu0 %130, %v85
    %v132 = vpop.permute.xlu0 %131
    %135 = vset.pattern.permute.xlu0 0
    %136 = vperm.xlu0 %135, %v86
    %v137 = vpop.permute.xlu0 %136
    %140 = vset.pattern.permute.xlu0 0
    %141 = vperm.xlu0 %140, %v87
    %v142 = vpop.permute.xlu0 %141
    %145 = vset.pattern.permute.xlu0 0
    %146 = vperm.xlu0 %145, %v88
    %v147 = vpop.permute.xlu0 %146
    %150 = vset.pattern.permute.xlu0 0
    %151 = vperm.xlu0 %150, %v89
    %v152 = vpop.permute.xlu0 %151
    %155 = vset.pattern.permute.xlu0 0
    %156 = vperm.xlu0 %155, %v90
    %v157 = vpop.permute.xlu0 %156
    %160 = vset.pattern.permute.xlu0 0
    %161 = vperm.xlu0 %160, %v91
    %v162 = vpop.permute.xlu0 %161
    %165 = vset.pattern.permute.xlu0 0
    %166 = vperm.xlu0 %165, %v92
    %v167 = vpop.permute.xlu0 %166
    %170 = vset.pattern.permute.xlu0 0
    %171 = vperm.xlu0 %170, %v93
    %v172 = vpop.permute.xlu0 %171
    %175 = vset.pattern.permute.xlu0 0
    %176 = vperm.xlu0 %175, %v94
    %v177 = vpop.permute.xlu0 %176
    %180 = vset.pattern.permute.xlu0 0
    %181 = vperm.xlu0 %180, %v95
    %v182 = vpop.permute.xlu0 %181
    %185 = vset.pattern.permute.xlu0 0
    %186 = vperm.xlu0 %185, %v96
    %v187 = vpop.permute.xlu0 %186
    %190 = vset.pattern.permute.xlu0 0
    %191 = vperm.xlu0 %190, %v97
    %v192 = vpop.permute.xlu0 %191
    %195 = vset.pattern.permute.xlu0 0
    %196 = vperm.xlu0 %195, %v98
    %v197 = vpop.permute.xlu0 %196
    %200 = vset.pattern.permute.xlu0 0
    %201 = vperm.xlu0 %200, %v99
    %v202 = vpop.permute.xlu0 %201
    %205 = vset.pattern.permute.xlu0 0
    %206 = vperm.xlu0 %205, %v100
    %v207 = vpop.permute.xlu0 %206
    %210 = vset.pattern.permute.xlu0 0
    %211 = vperm.xlu0 %210, %v101
    %v212 = vpop.permute.xlu0 %211
    %215 = vset.pattern.permute.xlu0 0
    %216 = vperm.xlu0 %215, %v102
    %v217 = vpop.permute.xlu0 %216
    %220 = vset.pattern.permute.xlu0 0
    %221 = vperm.xlu0 %220, %v103
    %v222 = vpop.permute.xlu0 %221
    %225 = vset.pattern.permute.xlu0 0
    %226 = vperm.xlu0 %225, %v104
    %v227 = vpop.permute.xlu0 %226
    %230 = vset.pattern.permute.xlu0 0
    %231 = vperm.xlu0 %230, %v105
    %v232 = vpop.permute.xlu0 %231
    %235 = vset.pattern.permute.xlu0 0
    %236 = vperm.xlu0 %235, %v106
    %v237 = vpop.permute.xlu0 %236
    %240 = vset.pattern.permute.xlu0 0
    %241 = vperm.xlu0 %240, %v107
    %v242 = vpop.permute.xlu0 %241
    %245 = vset.pattern.permute.xlu0 0
    %246 = vperm.xlu0 %245, %v108
    %v247 = vpop.permute.xlu0 %246
    %250 = vset.pattern.permute.xlu0 0
    %251 = vperm.xlu0 %250, %v109
    %v252 = vpop.permute.xlu0 %251
    %255 = vset.pattern.permute.xlu0 0
    %256 = vperm.xlu0 %255, %v110
    %v257 = vpop.permute.xlu0 %256
    %260 = vset.pattern.permute.xlu0 0
    %261 = vperm.xlu0 %260, %v111
    %v262 = vpop.permute.xlu0 %261
    %265 = vset.pattern.permute.xlu0 0
    %266 = vperm.xlu0 %265, %v112
    %v267 = vpop.permute.xlu0 %266
    %270 = vset.pattern.permute.xlu0 0
    %271 = vperm.xlu0 %270, %v113
    %v272 = vpop.permute.xlu0 %271
    %v274 = vmul.f32 %v18, %v117
    %v275 = vmul.f32 %v19, %v122
    %v276 = vmul.f32 %v20, %v127
    %v277 = vmul.f32 %v21, %v132
    %v278 = vmul.f32 %v22, %v137
    %v279 = vmul.f32 %v23, %v142
    %v280 = vmul.f32 %v24, %v147
    %v281 = vmul.f32 %v25, %v152
    %v282 = vmul.f32 %v26, %v157
    %v283 = vmul.f32 %v27, %v162
    %v284 = vmul.f32 %v28, %v167
    %v285 = vmul.f32 %v29, %v172
    %v286 = vmul.f32 %v30, %v177
    %v287 = vmul.f32 %v31, %v182
    %v288 = vmul.f32 %v32, %v187
    %v289 = vmul.f32 %v33, %v192
    %v290 = vmul.f32 %v34, %v197
    %v291 = vmul.f32 %v35, %v202
    %v292 = vmul.f32 %v36, %v207
    %v293 = vmul.f32 %v37, %v212
    %v294 = vmul.f32 %v38, %v217
    %v295 = vmul.f32 %v39, %v222
    %v296 = vmul.f32 %v40, %v227
    %v297 = vmul.f32 %v41, %v232
    %v298 = vmul.f32 %v42, %v237
    %v299 = vmul.f32 %v43, %v242
    %v300 = vmul.f32 %v44, %v247
    %v301 = vmul.f32 %v45, %v252
    %v302 = vmul.f32 %v46, %v257
    %v303 = vmul.f32 %v47, %v262
    %v304 = vmul.f32 %v48, %v267
    %v305 = vmul.f32 %v49, %v272
    %v306 = vmul.f32 %v50, %v117
    %v307 = vmul.f32 %v51, %v122
    %v308 = vmul.f32 %v52, %v127
    %v309 = vmul.f32 %v53, %v132
    %v310 = vmul.f32 %v54, %v137
    %v311 = vmul.f32 %v55, %v142
    %v312 = vmul.f32 %v56, %v147
    %v313 = vmul.f32 %v57, %v152
    %v314 = vmul.f32 %v58, %v157
    %v315 = vmul.f32 %v59, %v162
    %v316 = vmul.f32 %v60, %v167
    %v317 = vmul.f32 %v61, %v172
    %v318 = vmul.f32 %v62, %v177
    %v319 = vmul.f32 %v63, %v182
    %v320 = vmul.f32 %v64, %v187
    %v321 = vmul.f32 %v65, %v192
    %v322 = vmul.f32 %v66, %v197
    %v323 = vmul.f32 %v67, %v202
    %v324 = vmul.f32 %v68, %v207
    %v325 = vmul.f32 %v69, %v212
    %v326 = vmul.f32 %v70, %v217
    %v327 = vmul.f32 %v71, %v222
    %v328 = vmul.f32 %v72, %v227
    %v329 = vmul.f32 %v73, %v232
    %v330 = vmul.f32 %v74, %v237
    %v331 = vmul.f32 %v75, %v242
    %v332 = vmul.f32 %v76, %v247
    %v333 = vmul.f32 %v77, %v252
    %v334 = vmul.f32 %v78, %v257
    %v335 = vmul.f32 %v79, %v262
    %v336 = vmul.f32 %v80, %v267
    %v337 = vmul.f32 %v81, %v272
    %vm338 = vcmask 261120
    %v339 = vsel %vm338, %v274, 0.0
    %v340 = vsel %vm338, %v275, 0.0
    %v341 = vadd.f32 %v339, %v340
    %v342 = vsel %vm338, %v276, 0.0
    %v343 = vadd.f32 %v341, %v342
    %v344 = vsel %vm338, %v277, 0.0
    %v345 = vadd.f32 %v343, %v344
    %v346 = vsel %vm338, %v278, 0.0
    %v347 = vadd.f32 %v345, %v346
    %v348 = vsel %vm338, %v279, 0.0
    %v349 = vadd.f32 %v347, %v348
    %v350 = vsel %vm338, %v280, 0.0
    %v351 = vadd.f32 %v349, %v350
    %v352 = vsel %vm338, %v281, 0.0
    %v353 = vadd.f32 %v351, %v352
    %v354 = vsel %vm338, %v282, 0.0
    %v355 = vadd.f32 %v353, %v354
    %v356 = vsel %vm338, %v283, 0.0
    %v357 = vadd.f32 %v355, %v356
    %v358 = vsel %vm338, %v284, 0.0
    %v359 = vadd.f32 %v357, %v358
    %v360 = vsel %vm338, %v285, 0.0
    %v361 = vadd.f32 %v359, %v360
    %v362 = vsel %vm338, %v286, 0.0
    %v363 = vadd.f32 %v361, %v362
    %v364 = vsel %vm338, %v287, 0.0
    %v365 = vadd.f32 %v363, %v364
    %v366 = vsel %vm338, %v288, 0.0
    %v367 = vadd.f32 %v365, %v366
    %v368 = vsel %vm338, %v289, 0.0
    %v369 = vadd.f32 %v367, %v368
    %v370 = vsel %vm338, %v290, 0.0
    %v371 = vadd.f32 %v369, %v370
    %v372 = vsel %vm338, %v291, 0.0
    %v373 = vadd.f32 %v371, %v372
    %v374 = vsel %vm338, %v292, 0.0
    %v375 = vadd.f32 %v373, %v374
    %v376 = vsel %vm338, %v293, 0.0
    %v377 = vadd.f32 %v375, %v376
    %v378 = vsel %vm338, %v294, 0.0
    %v379 = vadd.f32 %v377, %v378
    %v380 = vsel %vm338, %v295, 0.0
    %v381 = vadd.f32 %v379, %v380
    %v382 = vsel %vm338, %v296, 0.0
    %v383 = vadd.f32 %v381, %v382
    %v384 = vsel %vm338, %v297, 0.0
    %v385 = vadd.f32 %v383, %v384
    %v386 = vsel %vm338, %v298, 0.0
    %v387 = vadd.f32 %v385, %v386
    %v388 = vsel %vm338, %v299, 0.0
    %v389 = vadd.f32 %v387, %v388
    %v390 = vsel %vm338, %v300, 0.0
    %v391 = vadd.f32 %v389, %v390
    %v392 = vsel %vm338, %v301, 0.0
    %v393 = vadd.f32 %v391, %v392
    %v394 = vsel %vm338, %v302, 0.0
    %v395 = vadd.f32 %v393, %v394
    %v396 = vsel %vm338, %v303, 0.0
    %v397 = vadd.f32 %v395, %v396
    %v398 = vsel %vm338, %v304, 0.0
    %v399 = vadd.f32 %v397, %v398
    %vm400 = vcmask 257024
    %v401 = vsel %vm400, %v305, 0.0
    %v402 = vadd.f32 %v399, %v401
    %v403 = vrot.slane %v402, 4
    %v404 = vadd.f32 %v402, %v403
    %v405 = vrot.slane %v404, 2
    %v406 = vadd.f32 %v404, %v405
    %v407 = vrot.slane %v406, 1
    %v408 = vadd.f32 %v406, %v407
    %v409 = vsel %vm338, %v306, 0.0
    %v410 = vsel %vm338, %v307, 0.0
    %v411 = vadd.f32 %v409, %v410
    %v412 = vsel %vm338, %v308, 0.0
    %v413 = vadd.f32 %v411, %v412
    %v414 = vsel %vm338, %v309, 0.0
    %v415 = vadd.f32 %v413, %v414
    %v416 = vsel %vm338, %v310, 0.0
    %v417 = vadd.f32 %v415, %v416
    %v418 = vsel %vm338, %v311, 0.0
    %v419 = vadd.f32 %v417, %v418
    %v420 = vsel %vm338, %v312, 0.0
    %v421 = vadd.f32 %v419, %v420
    %v422 = vsel %vm338, %v313, 0.0
    %v423 = vadd.f32 %v421, %v422
    %v424 = vsel %vm338, %v314, 0.0
    %v425 = vadd.f32 %v423, %v424
    %v426 = vsel %vm338, %v315, 0.0
    %v427 = vadd.f32 %v425, %v426
    %v428 = vsel %vm338, %v316, 0.0
    %v429 = vadd.f32 %v427, %v428
    %v430 = vsel %vm338, %v317, 0.0
    %v431 = vadd.f32 %v429, %v430
    %v432 = vsel %vm338, %v318, 0.0
    %v433 = vadd.f32 %v431, %v432
    %v434 = vsel %vm338, %v319, 0.0
    %v435 = vadd.f32 %v433, %v434
    %v436 = vsel %vm338, %v320, 0.0
    %v437 = vadd.f32 %v435, %v436
    %v438 = vsel %vm338, %v321, 0.0
    %v439 = vadd.f32 %v437, %v438
    %v440 = vsel %vm338, %v322, 0.0
    %v441 = vadd.f32 %v439, %v440
    %v442 = vsel %vm338, %v323, 0.0
    %v443 = vadd.f32 %v441, %v442
    %v444 = vsel %vm338, %v324, 0.0
    %v445 = vadd.f32 %v443, %v444
    %v446 = vsel %vm338, %v325, 0.0
    %v447 = vadd.f32 %v445, %v446
    %v448 = vsel %vm338, %v326, 0.0
    %v449 = vadd.f32 %v447, %v448
    %v450 = vsel %vm338, %v327, 0.0
    %v451 = vadd.f32 %v449, %v450
    %v452 = vsel %vm338, %v328, 0.0
    %v453 = vadd.f32 %v451, %v452
    %v454 = vsel %vm338, %v329, 0.0
    %v455 = vadd.f32 %v453, %v454
    %v456 = vsel %vm338, %v330, 0.0
    %v457 = vadd.f32 %v455, %v456
    %v458 = vsel %vm338, %v331, 0.0
    %v459 = vadd.f32 %v457, %v458
    %v460 = vsel %vm338, %v332, 0.0
    %v461 = vadd.f32 %v459, %v460
    %v462 = vsel %vm338, %v333, 0.0
    %v463 = vadd.f32 %v461, %v462
    %v464 = vsel %vm338, %v334, 0.0
    %v465 = vadd.f32 %v463, %v464
    %v466 = vsel %vm338, %v335, 0.0
    %v467 = vadd.f32 %v465, %v466
    %v468 = vsel %vm338, %v336, 0.0
    %v469 = vadd.f32 %v467, %v468
    %v470 = vsel %vm400, %v337, 0.0
    %v471 = vadd.f32 %v469, %v470
    %v472 = vrot.slane %v471, 4
    %v473 = vadd.f32 %v471, %v472
    %v474 = vrot.slane %v473, 2
    %v475 = vadd.f32 %v473, %v474
    %v476 = vrot.slane %v475, 1
    %v477 = vadd.f32 %v475, %v476
    %v478 = vld [vmem:[%s2] sm:$0xff]
    %v479 = vld [vmem:[%s2 + $0x8] sm:$0xff]
    %v480 = vld [vmem:[%s2 + $0x10] sm:$0xff]
    %v481 = vld [vmem:[%s2 + $0x18] sm:$0xff]
    %v482 = vld [vmem:[%s3] sm:$0x1]
    %v484 = vlaneseq
    %v485 = vshrl.u32 %v484, 7
    %v486 = vsub.s32 0, %v485
    %v487 = vrot.slane %v482, %v486
    %vm491 = vcmask 1041409
    %v492 = vsel %vm491, %v477, %v408
    %v493 = vsel %vm338, %v492, 0
    %495 = vmatprep.subr.mxu0 0.0
    %496 = vmatpush1.msra.mxu0 %v478
    %497 = vmatprep.subr.mxu0 0.0
    %498 = vmatpush1.msra.mxu0 %v479
    %499 = vmatprep.subr.mxu0 0.0
    %500 = vmatpush1.msra.mxu0 %v480
    %501 = vmatprep.subr.mxu0 0.0
    %502 = vmatpush1.msra.mxu0 %v481
    %503 = vmatprep.subr.mxu0 0.0
    %504 = vmatpush1.msra.mxu0 0.0
    %505 = vmatprep.subr.mxu0 0.0
    %506 = vmatpush1.msra.mxu0 0.0
    %507 = vmatprep.subr.mxu0 0.0
    %508 = vmatpush1.msra.mxu0 0.0
    %509 = vmatprep.subr.mxu0 0.0
    %510 = vmatpush1.msra.mxu0 0.0
    %511 = vmatprep.subr.mxu0 0.0
    %512 = vmatpush1.msra.mxu0 0.0
    %513 = vmatprep.subr.mxu0 0.0
    %514 = vmatpush1.msra.mxu0 0.0
    %515 = vmatprep.subr.mxu0 0.0
    %516 = vmatpush1.msra.mxu0 0.0
    %517 = vmatprep.subr.mxu0 0.0
    %518 = vmatpush1.msra.mxu0 0.0
    %519 = vmatprep.subr.mxu0 0.0
    %520 = vmatpush1.msra.mxu0 0.0
    %521 = vmatprep.subr.mxu0 0.0
    %522 = vmatpush1.msra.mxu0 0.0
    %523 = vmatprep.subr.mxu0 0.0
    %524 = vmatpush1.msra.mxu0 0.0
    %525 = vmatprep.subr.mxu0 0.0
    %526 = vmatpush1.msra.mxu0 0.0
    %527 = vmatprep.subr.mxu0 0.0
    %528 = vmatpush1.msra.mxu0 0.0
    %529 = vmatprep.subr.mxu0 0.0
    %530 = vmatpush1.msra.mxu0 0.0
    %531 = vmatprep.subr.mxu0 0.0
    %532 = vmatpush1.msra.mxu0 0.0
    %533 = vmatprep.subr.mxu0 0.0
    %534 = vmatpush1.msra.mxu0 0.0
    %535 = vmatprep.subr.mxu0 0.0
    %536 = vmatpush1.msra.mxu0 0.0
    %537 = vmatprep.subr.mxu0 0.0
    %538 = vmatpush1.msra.mxu0 0.0
    %539 = vmatprep.subr.mxu0 0.0
    %540 = vmatpush1.msra.mxu0 0.0
    %541 = vmatprep.subr.mxu0 0.0
    %542 = vmatpush1.msra.mxu0 0.0
    %543 = vmatprep.subr.mxu0 0.0
    %544 = vmatpush1.msra.mxu0 0.0
    %545 = vmatprep.subr.mxu0 0.0
    %546 = vmatpush1.msra.mxu0 0.0
    %547 = vmatprep.subr.mxu0 0.0
    %548 = vmatpush1.msra.mxu0 0.0
    %549 = vmatprep.subr.mxu0 0.0
    %550 = vmatpush1.msra.mxu0 0.0
    %551 = vmatprep.subr.mxu0 0.0
    %552 = vmatpush1.msra.mxu0 0.0
    %553 = vmatprep.subr.mxu0 0.0
    %554 = vmatpush1.msra.mxu0 0.0
    %555 = vmatprep.subr.mxu0 0.0
    %556 = vmatpush1.msra.mxu0 0.0
    %557 = vmatprep.subr.mxu0 0.0
    %558 = vmatpush1.msra.mxu0 0.0
    %559 = vmatprep.mubr.f32.mxu0 0.0
    %560 = vmatmul.mubr.f32.gmra.mrb[0].mxu0 %v493
    %v561 = vpop.f32.mrb[0].mxu0
    %v562 = vadd.f32 %v487, %v561
    %v563 = vpop.f32.mrb[0].mxu0
    %564 = vdwg.mxu0
    %vm565 = vcmask 1041408
    %v566 = vsel %vm565, %v562, -inf
    %567 = vmax.xlane.f32.xlu0 %v566
    %v568 = vpop.xlane.xlu0 %567
    %v569 = vsub.f32 %v562, %v568
    %v570 = vmul.f32 %v569, 1.442695
    %v571 = vpow.pop %v570
    %v572 = vsel %vm565, %v571, 0.0
    %573 = vadd.xlane.f32.xlu0 %v572
    %v574 = vpop.xlane.xlu0 %573
    %v575 = vlog2.pop %v574
    %v576 = vmul.f32 %v575, 0.6931472
    %v577 = vadd.f32 %v568, %v576
    %v578 = vsub.f32 %v562, %v577
    %579 = vst [vmem:[#allocation2] sm:$0x3] %v578
    // Predicated region
    $region18: #{tpu_custom_call.1} parent=1 // pred_check
      _
    $region19: #{tpu_custom_call.1} parent=1 // pred_check_branch
      %581 = sbr.rel (0) target = $region21
    $region20: #{tpu_custom_call.1} parent=1 // pred_region
      %s583 = ssub.s32 32, 32
      %584 = vsyncadd [#allocation3], %s583
      %s586 = sshll.u32 [#allocation2], 4
      %s587 = int_to_ptr.vmem [resolvable:$true] %s586
      %589 = dma.vmem_to_hbm [thread:$0]  %s587, 32, %s4, [#allocation3]
    $region21: #{tpu_custom_call.1} parent=1 // pred_fallthru
      _
    // Predicated region
    $region22: #{tpu_custom_call.1} parent=1 // pred_check
      _
    $region23: #{tpu_custom_call.1} parent=1 // pred_check_branch
      %591 = sbr.rel (0) target = $region25
    $region24: #{tpu_custom_call.1} parent=1 // pred_region
      %592 = dma.done [#allocation3], 32
    $region25: #{tpu_custom_call.1} parent=1 // pred_fallthru
      _
    %593 = vsyncpa [#allocation3], 1

</llo_original>
